<compile_context>
chip_gen: v6e
topology: v6e:2x2x1
jax: 0.10.0
libtpu: 0.0.40
codegen_flags: <defaults>
</compile_context>

<pallas_src>
import functools

import jax
import jax.numpy as jnp
from jax import lax
from jax.experimental import pallas as pl
from jax.experimental.pallas import tpu as pltpu


def _round_up(n, m):
    return (n + m - 1) // m * m


def _vmem_capacity_bytes():
    try:
        info = pltpu.get_tpu_info()
        cap = getattr(info, "vmem_capacity_bytes", None)
        if cap:
            return int(cap)
    except Exception:
        pass
    return 64 * 1024 * 1024  # smallest current generation (v7x per-core); safe fallback


def _budget_and_cap():
    cap = _vmem_capacity_bytes()
    # Leave headroom for compiler scratch; 48 MiB on v7x, 100 MiB on v5e/v6e.
    hard_cap = min(cap - (16 << 20), 100 << 20)
    return hard_cap


# ----------------------------------------------------------------------------
# Implementation 1: one-hot permutation matmul on the MXU (short / medium L).
# ----------------------------------------------------------------------------
def _onehot_gather_kernel(idx_ref, x_ref, o_ref):
    # idx_ref: VMEM (1, TQ, 1) int32 — gather row index for each output row
    # x_ref:   VMEM (1, L,  TD)      — full source sequence, one feature tile
    # o_ref:   VMEM (1, TQ, TD)      — reordered output tile
    tq = o_ref.shape[1]
    l = x_ref.shape[1]

    idx = idx_ref[0]                                           # (TQ, 1)
    onehot = (lax.broadcasted_iota(jnp.int32, (tq, l), 1) == idx)

    x = x_ref[0]                                               # (L, TD)
    if x_ref.dtype == jnp.float32:
        # Exact 3-plane bf16 decomposition: x == hi + mid + lo bit-exactly and
        # the 0/1 one-hot is exact in bf16, so 3 DEFAULT-precision MXU passes
        # reproduce the f32 gather bit-exactly (vs 6 passes for HIGHEST).
        oh = onehot.astype(jnp.bfloat16)
        hi = x.astype(jnp.bfloat16)
        r1 = x - hi.astype(jnp.float32)
        mid = r1.astype(jnp.bfloat16)
        lo = (r1 - mid.astype(jnp.float32)).astype(jnp.bfloat16)
        acc = jnp.dot(oh, hi, preferred_element_type=jnp.float32)
        acc = acc + jnp.dot(oh, mid, preferred_element_type=jnp.float32)
        acc = acc + jnp.dot(oh, lo, preferred_element_type=jnp.float32)
    else:
        acc = jnp.dot(onehot.astype(x_ref.dtype), x,
                      preferred_element_type=jnp.float32)

    o_ref[0] = acc.astype(o_ref.dtype)


def _onehot_call(x, idx):
    B, L, D = x.shape
    dtype = x.dtype
    itemsize = jnp.dtype(dtype).itemsize
    is_f32 = dtype == jnp.float32

    pack = max(8, 32 // itemsize)        # sublane packing of the data dtype
    hard_cap = _budget_and_cap()

    TQ = min(_round_up(L, pack), 512)
    if TQ > L:                           # tiny-L: keep the block within bounds
        TQ = _round_up(L, 8)
    TD = min(_round_up(D, 128), 1024)

    def need(tq, td):
        src = 2 * L * td * itemsize                        # double-buffered source block
        outb = 2 * tq * td * itemsize                      # double-buffered output block
        idxb = 2 * tq * 4
        onehot = tq * _round_up(L, 128) * (4 + max(itemsize, 2))  # iota + compare/cast
        acc = tq * td * 4                                  # f32 matmul result
        split = (3 * L * td * 2 + 2 * L * td * 4) if is_f32 else 0  # bf16 planes + residuals
        return src + outb + idxb + onehot + acc + split + (2 << 20)

    # Shrink TQ before TD (keep the lane/MXU-N dim >= 384 where possible).
    while need(TQ, TD) > hard_cap and TQ > 4 * pack:
        TQ = _round_up(TQ // 2, pack)
    while need(TQ, TD) > hard_cap and TD > 384:
        TD -= 128
    while need(TQ, TD) > hard_cap and TQ > pack:
        TQ = _round_up(TQ // 2, pack)
    while need(TQ, TD) > hard_cap and TD > 128:
        TD -= 128

    # Pad only the tiny index table so index blocks never read OOB.
    Lq = _round_up(L, TQ)
    idx_p = idx if Lq == L else jnp.pad(idx, ((0, 0), (0, Lq - L)))
    idx_col = idx_p[:, :, None]                            # (B, Lq, 1)

    n_d = pl.cdiv(D, TD)
    n_q = Lq // TQ
    grid = (B, n_d, n_q)                                   # Q innermost -> source block reused

    q_sem = "parallel" if (B * n_d == 1) else "arbitrary"
    vmem_limit = int(min(hard_cap, max(int(need(TQ, TD) * 1.5), 32 << 20)))

    return pl.pallas_call(
        _onehot_gather_kernel,
        out_shape=jax.ShapeDtypeStruct((B, L, D), dtype),
        grid=grid,
        in_specs=[
            pl.BlockSpec((1, TQ, 1), lambda b, d, q: (b, q, 0)),   # gather indices
            pl.BlockSpec((1, L, TD), lambda b, d, q: (b, 0, d)),   # source rows
        ],
        out_specs=pl.BlockSpec((1, TQ, TD), lambda b, d, q: (b, q, d)),
        compiler_params=pltpu.CompilerParams(
            dimension_semantics=("parallel", "parallel", q_sem),
            vmem_limit_bytes=vmem_limit,
        ),
        cost_estimate=pl.CostEstimate(
            flops=2 * B * L * L * _round_up(D, 128) * (3 if is_f32 else 1),
            transcendentals=0,
            bytes_accessed=2 * B * L * D * itemsize + B * Lq * 4,
        ),
    )(idx_col, x)


# ----------------------------------------------------------------------------
# Implementation 2: vld/vst row gather (long L and/or f32) — no MXU, no L^2.
# ----------------------------------------------------------------------------
def _row_gather_kernel(idx_ref, x_ref, o_ref, *, seq_len, lq):
    # idx_ref: SMEM (B*Lq,) int32 — scalar-prefetched gather table
    # x_ref:   VMEM (1, L, TD)    — full source sequence, one feature tile
    # o_ref:   VMEM (1, TQ, TD)   — reordered output tile
    b = pl.program_id(0)
    q = pl.program_id(2)
    tq = o_ref.shape[1]
    base = b * lq + q * tq

    def body(i, carry):
        src = idx_ref[base + i]
        src = jnp.minimum(jnp.maximum(src, 0), seq_len - 1)    # defensive clamp
        o_ref[0, pl.ds(i, 1), :] = x_ref[0, pl.ds(src, 1), :]
        return carry

    lax.fori_loop(0, tq, body, 0)


def _row_gather_call(x, idx):
    B, L, D = x.shape
    dtype = x.dtype
    itemsize = jnp.dtype(dtype).itemsize

    pack = max(8, 32 // itemsize)
    hard_cap = _budget_and_cap()

    TQ = min(_round_up(L, pack), 512)
    if TQ > L:
        TQ = _round_up(L, 8)
    TD = min(_round_up(D, 128), 1024)

    def need(tq, td):
        src = 2 * L * td * itemsize
        outb = 2 * tq * td * itemsize
        return src + outb + (2 << 20)

    while need(TQ, TD) > hard_cap and TD > 128:
        TD -= 128
    while need(TQ, TD) > hard_cap and TQ > pack:
        TQ = _round_up(TQ // 2, pack)

    Lq = _round_up(L, TQ)
    idx_p = idx if Lq == L else jnp.pad(idx, ((0, 0), (0, Lq - L)))
    idx_flat = idx_p.reshape(-1).astype(jnp.int32)          # (B*Lq,) -> SMEM

    n_d = pl.cdiv(D, TD)
    n_q = Lq // TQ
    grid = (B, n_d, n_q)

    q_sem = "parallel" if (B * n_d == 1) else "arbitrary"
    vmem_limit = int(min(hard_cap, max(int(need(TQ, TD) * 1.5), 32 << 20)))

    kernel = functools.partial(_row_gather_kernel, seq_len=L, lq=Lq)

    return pl.pallas_call(
        kernel,
        out_shape=jax.ShapeDtypeStruct((B, L, D), dtype),
        grid_spec=pltpu.PrefetchScalarGridSpec(
            num_scalar_prefetch=1,
            grid=grid,
            in_specs=[pl.BlockSpec((1, L, TD), lambda b, d, q, *_: (b, 0, d))],
            out_specs=pl.BlockSpec((1, TQ, TD), lambda b, d, q, *_: (b, q, d)),
        ),
        compiler_params=pltpu.CompilerParams(
            dimension_semantics=("parallel", "parallel", q_sem),
            vmem_limit_bytes=vmem_limit,
        ),
        cost_estimate=pl.CostEstimate(
            flops=0,
            transcendentals=0,
            bytes_accessed=2 * B * L * D * itemsize + B * Lq * 4,
        ),
    )(idx_flat, x)


# ----------------------------------------------------------------------------
# Public wrapper (forward pass of BatchRandomScan).
# ----------------------------------------------------------------------------
def batch_random_scan(hidden_states, base_perm, shifts, *, force_impl=None):
    """Pallas implementation of BatchRandomScan.forward.

    hidden_states: (B, L, D) float
    base_perm:     (L,) int32 — random permutation of [0, L)  (torch.randperm)
    shifts:        (B,) int32 — per-batch shift in [0, L)      (torch.randint)
    Returns (B, L, D) reordered hidden states.
    """
    B, L, D = hidden_states.shape

    # Fused gather table: idx[b, i] = base_perm[(i + shifts[b]) % L]
    pos = jnp.arange(L, dtype=jnp.int32)[None, :]
    shifted = (pos + shifts.astype(jnp.int32)[:, None]) % L
    idx = base_perm.astype(jnp.int32)[shifted]               # (B, L)

    if force_impl is None:
        # One-hot matmul FLOPs scale as L^2*D and fall off the HBM roofline for
        # long sequences (earlier for f32, which needs 3 bf16 MXU passes).
        is_f32 = hidden_states.dtype == jnp.float32
        impl = "gather" if L >= (512 if is_f32 else 1024) else "onehot"
    else:
        impl = force_impl

    if impl == "gather":
        return _row_gather_call(hidden_states, idx)
    return _onehot_call(hidden_states, idx)


def batch_random_scan_reference(hidden_states, base_perm, shifts):
    B, L, D = hidden_states.shape
    indices = jnp.arange(L, dtype=jnp.int32)[None, :]
    shifted = (indices + shifts[:, None]) % L
    random_indices = base_perm[shifted]
    return jnp.take_along_axis(hidden_states, random_indices[:, :, None], axis=1)


if __name__ == "__main__":
    B, L, D = 2, 8, 32

    key = jax.random.PRNGKey(0)
    k_x, k_perm, k_shift = jax.random.split(key, 3)

    hidden_states = jax.random.normal(k_x, (B, L, D), dtype=jnp.float32)
    # Deterministic stand-ins for torch.randperm(L) / torch.randint(0, L, (B,))
    base_perm = jax.random.permutation(k_perm, L).astype(jnp.int32)
    shifts = jax.random.randint(k_shift, (B,), 0, L, dtype=jnp.int32)

    ref = batch_random_scan_reference(hidden_states, base_perm, shifts)

    # Default dispatch (f32, short L -> one-hot MXU path with 3-plane split).
    out = jax.block_until_ready(batch_random_scan(hidden_states, base_perm, shifts))
    assert out.shape == (B, L, D)
    assert jnp.allclose(out, ref, atol=1e-6, rtol=1e-6), "one-hot (f32) mismatch"

    # Row-gather path (used by default for long sequences) at the same shape.
    out_g = jax.block_until_ready(
        batch_random_scan(hidden_states, base_perm, shifts, force_impl="gather"))
    assert jnp.allclose(out_g, ref, atol=0.0, rtol=0.0), "row-gather mismatch"

    # bf16 one-hot path.
    hs_bf16 = hidden_states.astype(jnp.bfloat16)
    ref_b = batch_random_scan_reference(hs_bf16, base_perm, shifts)
    out_b = jax.block_until_ready(
        batch_random_scan(hs_bf16, base_perm, shifts, force_impl="onehot"))
    assert jnp.allclose(out_b.astype(jnp.float32), ref_b.astype(jnp.float32),
                        atol=0.0, rtol=0.0), "one-hot (bf16) mismatch"

    print("KERNEL_OK")
</pallas_src>

<mosaic_0001>
module attributes {stable_mosaic.version = 11 : i64} {
  func.func @_onehot_gather_kernel(%arg0: i32, %arg1: i32, %arg2: i32, %arg3: memref<1x8x1xi32, #tpu.memory_space<vmem>>, %arg4: memref<1x8x128xf32, #tpu.memory_space<vmem>>, %arg5: memref<1x8x128xf32, #tpu.memory_space<vmem>>) attributes {dimension_semantics = [#tpu.dimension_semantics<parallel>, #tpu.dimension_semantics<parallel>, #tpu.dimension_semantics<arbitrary>], iteration_bounds = array<i64: 2, 1, 1>, scalar_prefetch = 0 : i64, scratch_operands = 0 : i64, tpu.core_type = #tpu.core_type<tc>, window_params = [{transform_indices = @transform_0, window_bounds = array<i64: 1, 8, 1>}, {transform_indices = @transform_1, window_bounds = array<i64: 1, 8, 128>}, {transform_indices = @transform_2, window_bounds = array<i64: 1, 8, 128>}]} {
    %c0 = arith.constant 0 : index
    %c0_0 = arith.constant 0 : index
    %c0_1 = arith.constant 0 : index
    %0 = vector.load %arg3[%c0, %c0_0, %c0_1] : memref<1x8x1xi32, #tpu.memory_space<vmem>>, vector<1x8x1xi32>
    %1 = vector.shape_cast %0 : vector<1x8x1xi32> to vector<8x1xi32>
    %2 = tpu.iota {dimensions = array<i32: 1>} : vector<8x8xi32>
    %3 = vector.broadcast %1 : vector<8x1xi32> to vector<8x8xi32>
    %4 = arith.cmpi eq, %2, %3 : vector<8x8xi32>
    %c0_2 = arith.constant 0 : index
    %c0_3 = arith.constant 0 : index
    %c0_4 = arith.constant 0 : index
    %5 = vector.load %arg4[%c0_2, %c0_3, %c0_4] : memref<1x8x128xf32, #tpu.memory_space<vmem>>, vector<1x8x128xf32>
    %6 = vector.shape_cast %5 : vector<1x8x128xf32> to vector<8x128xf32>
    %7 = arith.extui %4 : vector<8x8xi1> to vector<8x8xi32>
    %8 = arith.sitofp %7 : vector<8x8xi32> to vector<8x8xf32>
    %9 = arith.truncf %8 : vector<8x8xf32> to vector<8x8xbf16>
    %10 = arith.truncf %6 : vector<8x128xf32> to vector<8x128xbf16>
    %11 = arith.extf %10 : vector<8x128xbf16> to vector<8x128xf32>
    %12 = arith.subf %6, %11 : vector<8x128xf32>
    %13 = arith.truncf %12 : vector<8x128xf32> to vector<8x128xbf16>
    %14 = arith.extf %13 : vector<8x128xbf16> to vector<8x128xf32>
    %15 = arith.subf %12, %14 : vector<8x128xf32>
    %16 = arith.truncf %15 : vector<8x128xf32> to vector<8x128xbf16>
    %cst = arith.constant dense<0.000000e+00> : vector<8x128xf32>
    %17 = tpu.matmul %9, %10, %cst {dimension_numbers = #tpu.dot_dimension_numbers<[1], [0], [0], [1], [0, 0, 1, 1], [], []>} : vector<8x8xbf16>, vector<8x128xbf16>, vector<8x128xf32> -> vector<8x128xf32>
    %cst_5 = arith.constant dense<0.000000e+00> : vector<8x128xf32>
    %18 = tpu.matmul %9, %13, %cst_5 {dimension_numbers = #tpu.dot_dimension_numbers<[1], [0], [0], [1], [0, 0, 1, 1], [], []>} : vector<8x8xbf16>, vector<8x128xbf16>, vector<8x128xf32> -> vector<8x128xf32>
    %19 = arith.addf %17, %18 : vector<8x128xf32>
    %cst_6 = arith.constant dense<0.000000e+00> : vector<8x128xf32>
    %20 = tpu.matmul %9, %16, %cst_6 {dimension_numbers = #tpu.dot_dimension_numbers<[1], [0], [0], [1], [0, 0, 1, 1], [], []>} : vector<8x8xbf16>, vector<8x128xbf16>, vector<8x128xf32> -> vector<8x128xf32>
    %21 = arith.addf %19, %20 : vector<8x128xf32>
    %c0_7 = arith.constant 0 : index
    %c0_8 = arith.constant 0 : index
    %c0_9 = arith.constant 0 : index
    %22 = vector.load %arg5[%c0_7, %c0_8, %c0_9] : memref<1x8x128xf32, #tpu.memory_space<vmem>>, vector<1x8x128xf32>
    %23 = vector.shape_cast %22 : vector<1x8x128xf32> to vector<8x128xf32>
    %24 = vector.shape_cast %21 : vector<8x128xf32> to vector<1x8x128xf32>
    tpu.vector_store %arg5[%c0_7, %c0_8, %c0_9], %24 {strides = array<i32>} : memref<1x8x128xf32, #tpu.memory_space<vmem>>, vector<1x8x128xf32>,
    return
  }
  func.func @transform_0(%arg0: i32, %arg1: i32, %arg2: i32) -> (i32, i32, i32) {
    %c0_i32 = arith.constant 0 : i32
    %c0_i32_0 = arith.constant 0 : i32
    return %arg0, %arg2, %c0_i32 : i32, i32, i32
  }
  func.func @transform_1(%arg0: i32, %arg1: i32, %arg2: i32) -> (i32, i32, i32) {
    %c0_i32 = arith.constant 0 : i32
    %c0_i32_0 = arith.constant 0 : i32
    return %arg0, %c0_i32, %arg1 : i32, i32, i32
  }
  func.func @transform_2(%arg0: i32, %arg1: i32, %arg2: i32) -> (i32, i32, i32) {
    %c0_i32 = arith.constant 0 : i32
    return %arg0, %arg2, %arg1 : i32, i32, i32
  }
}

</mosaic_0001>

<llo_original>
// kernel: tpu_custom_call.1
$region0: #{tpu_custom_call.1}
  #allocation0 [shape = 'u32[]', space=smem, size = 0x4, offset = 0x4, fixed_abs, tag = 'smem constant byte address 0x4 - core index']
  #allocation1 [shape = 'u32[144,128]{1,0:T(1,128)}', space=vmem, size = 0x12000, scoped, tag = 'internal scratch']
  %s0 = inlined_call_operand.vmem [shape: s32[2,8,1], index: 0, kind: input, shape index: {}]
  %s1 = inlined_call_operand.vmem [shape: f32[2,8,32], index: 1, kind: input, shape index: {}]
  %s2 = inlined_call_operand.hbm [shape: f32[2,8,32], index: 2, kind: output, shape index: {}]
  %s3 = sld [smem:[#allocation0]]
  $region41: #{tpu_custom_call.1} parent=0
    _
  %s5 = ssub.s32 1, %s3
  %s6 = scalar_select 0, %s5, %s3
  $region1: #{tpu_custom_call.1} parent=0
    #allocation2 [shape = 'u8[8192]{0}', space=vmem, size = 0x2000, scoped, tag = 'output window, operand 0']
    #allocation3 [shape = 's32[2]{0}', space=sflag, size = 0x8, scoped, tag = 'scoped memory for tpu_custom_call.1']
    %7 = vsyncpa [#allocation3], 0
    %s8 = scalar_lea.sflag [#allocation3], 1
    %9 = vsyncpa %s8, 0
    loop: start=0, step=1, limit=4
    $region2: #{tpu_custom_call.1} parent=1 // loop_pre_header
      _
    $region3: #{tpu_custom_call.1} parent=1 // loop_header
      %s11 = sphi 0, %s15
      %p12 = scmp.ge.s32.totalorder %s11, 4
      %s18 = sphi 0, %s37
      %s19 = sphi 0, %s33
      %s20 = sphi 0, %s29
      %s21 = sphi 0, %s18
      %s22 = sphi 0, %s19
      %s23 = sphi 0, %s20
      %s24 = sphi 0, %s21
      %s25 = sphi 0, %s22
      %s26 = sphi 0, %s23
      %s42 = sphi 0, %s44
      %s45 = sphi 0, %s42
      %s46 = sphi 0, %s45
      %s62 = sphi 0, %s46
      %s70 = sphi 0, %s72
      %s73 = sphi 0, %s70
      %s74 = sphi 0, %s73
      %s90 = sphi 0, %s74
      %s100 = sphi 0, %s102
      %s103 = sphi 0, %s100
      %s104 = sphi 0, %s103
      %s120 = sphi 0, %s104
    $region4: #{tpu_custom_call.1} parent=1 // loop_header_branch
      %14 = sbr.rel (%p12) target = $region8
    $region5: #{tpu_custom_call.1} parent=1 // loop_body
      %s16 = ssub.s32 %s11, 1
      %s17 = ssub.s32 %s11, 2
      %s27 = sadd.s32 1, %s20
      %p28 = scmp.ge.s32.totalorder %s27, 1
      %s29 = scalar_select %p28, 0, %s27
      %s30 = sadd.s32 1, %s19
      %s31 = scalar_select %p28, %s30, %s19
      %p32 = scmp.ge.s32.totalorder %s31, 1
      %s33 = scalar_select %p32, 0, %s31
      %s34 = sadd.s32 1, %s18
      %s35 = scalar_select %p32, %s34, %s18
      %p36 = scmp.ge.s32.totalorder %s35, 2
      %s37 = scalar_select %p36, 0, %s35
      %s38 = ssub.s32 %s18, %s37
      %s39 = ssub.s32 %s20, %s29
      %s40 = sor.u32 %s38, %s39
      %p41 = scmp.eq.s32.totalorder %s40, 0
      %s43 = sadd.s32 %s42, 1
      %s44 = scalar_select %p41, %s42, %s43
      %p47 = pneg %p41
      %p48 = scmp.eq.s32.totalorder %s11, 1
      %p49 = por %p47, %p48
      %p50 = scmp.ne.s32.totalorder %s42, %s45
      %p51 = scmp.eq.s32.totalorder %s11, 0
      %p52 = por %p50, %p51
      %p53 = scmp.ne.s32.totalorder %s42, %s45
      %p54 = scmp.eq.s32.totalorder %s16, 1
      %p55 = por %p53, %p54
      %p56 = scmp.ne.s32.totalorder %s45, %s46
      %p57 = scmp.eq.s32.totalorder %s16, 0
      %p58 = por %p56, %p57
      %p59 = scmp.ne.s32.totalorder %s45, %s46
      %p60 = scmp.eq.s32.totalorder %s17, 1
      %p61 = por %p59, %p60
      %p63 = scmp.ne.s32.totalorder %s46, %s62
      %p64 = scmp.eq.s32.totalorder %s17, 0
      %p65 = por %p63, %p64
      %s66 = ssub.s32 %s18, %s37
      %s67 = ssub.s32 %s19, %s33
      %s68 = sor.u32 %s66, %s67
      %p69 = scmp.eq.s32.totalorder %s68, 0
      %s71 = sadd.s32 %s70, 1
      %s72 = scalar_select %p69, %s70, %s71
      %p75 = pneg %p69
      %p76 = scmp.eq.s32.totalorder %s11, 1
      %p77 = por %p75, %p76
      %p78 = scmp.ne.s32.totalorder %s70, %s73
      %p79 = scmp.eq.s32.totalorder %s11, 0
      %p80 = por %p78, %p79
      %p81 = scmp.ne.s32.totalorder %s70, %s73
      %p82 = scmp.eq.s32.totalorder %s16, 1
      %p83 = por %p81, %p82
      %p84 = scmp.ne.s32.totalorder %s73, %s74
      %p85 = scmp.eq.s32.totalorder %s16, 0
      %p86 = por %p84, %p85
      %p87 = scmp.ne.s32.totalorder %s73, %s74
      %p88 = scmp.eq.s32.totalorder %s17, 1
      %p89 = por %p87, %p88
      %p91 = scmp.ne.s32.totalorder %s74, %s90
      %p92 = scmp.eq.s32.totalorder %s17, 0
      %p93 = por %p91, %p92
      %s94 = ssub.s32 %s18, %s37
      %s95 = ssub.s32 %s20, %s29
      %s96 = sor.u32 %s94, %s95
      %s97 = ssub.s32 %s19, %s33
      %s98 = sor.u32 %s96, %s97
      %p99 = scmp.eq.s32.totalorder %s98, 0
      %s101 = sadd.s32 %s100, 1
      %s102 = scalar_select %p99, %s100, %s101
      %p105 = pneg %p99
      %p106 = scmp.eq.s32.totalorder %s11, 1
      %p107 = por %p105, %p106
      %p108 = scmp.ne.s32.totalorder %s100, %s103
      %p109 = scmp.eq.s32.totalorder %s11, 0
      %p110 = por %p108, %p109
      %p111 = scmp.ne.s32.totalorder %s100, %s103
      %p112 = scmp.eq.s32.totalorder %s16, 1
      %p113 = por %p111, %p112
      %p114 = scmp.ne.s32.totalorder %s103, %s104
      %p115 = scmp.eq.s32.totalorder %s16, 0
      %p116 = por %p114, %p115
      %p117 = scmp.ne.s32.totalorder %s103, %s104
      %p118 = scmp.eq.s32.totalorder %s17, 1
      %p119 = por %p117, %p118
      %p121 = scmp.ne.s32.totalorder %s104, %s120
      %p122 = scmp.eq.s32.totalorder %s17, 0
      %p123 = por %p121, %p122
      %p124 = scmp.le.s32.totalorder 1, %s11
      %p125 = scmp.lt.s32.totalorder %s11, 3
      %p126 = pnand %p124, %p125
      %p127 = pneg %p126
      // Predicated region
      $region9: #{tpu_custom_call.1} parent=5 // pred_check
        _
      $region10: #{tpu_custom_call.1} parent=5 // pred_check_branch
        %129 = sbr.rel (%p126) target = $region12
      $region11: #{tpu_custom_call.1} parent=5 // pred_region
        %s130 = ssub.s32 %s11, 1
      $region12: #{tpu_custom_call.1} parent=5 // pred_fallthru
        _
      %p131 = scmp.lt.s32.totalorder %s11, 2
      // Predicated region
      $region13: #{tpu_custom_call.1} parent=5 // pred_check
        %p132 = pneg %p131
      $region14: #{tpu_custom_call.1} parent=5 // pred_check_branch
        %134 = sbr.rel (%p132) target = $region16
      $region15: #{tpu_custom_call.1} parent=5 // pred_region
        // Predicated region
        $region17: #{tpu_custom_call.1} parent=15 // pred_check
          %p135 = pneg %p52
        $region18: #{tpu_custom_call.1} parent=15 // pred_check_branch
          %137 = sbr.rel (%p135) target = $region20
        $region19: #{tpu_custom_call.1} parent=15 // pred_region
          %p138 = scmp.lt.s32.totalorder %s18, 1
          %s139 = scalar_select %p138, %s18, 1
          %p140 = scmp.lt.s32.totalorder %s20, 0
          %s141 = scalar_select %p140, %s20, 0
          %s142 = sadd.s32 %s141, %s139
          %s143 = smul.addr %s142, 8
          %s144 = scalar_lea.vmem %s0, %s143
        $region20: #{tpu_custom_call.1} parent=15 // pred_fallthru
          _
        // Predicated region
        $region21: #{tpu_custom_call.1} parent=15 // pred_check
          %p145 = pneg %p80
        $region22: #{tpu_custom_call.1} parent=15 // pred_check_branch
          %147 = sbr.rel (%p145) target = $region24
        $region23: #{tpu_custom_call.1} parent=15 // pred_region
          %p148 = scmp.lt.s32.totalorder %s18, 1
          %s149 = scalar_select %p148, %s18, 1
          %p150 = scmp.lt.s32.totalorder %s19, 0
          %s151 = scalar_select %p150, %s19, 0
          %s152 = sadd.s32 %s151, %s149
          %s153 = smul.addr %s152, 8
          %s154 = scalar_lea.vmem %s1, %s153
        $region24: #{tpu_custom_call.1} parent=15 // pred_fallthru
          _
      $region16: #{tpu_custom_call.1} parent=5 // pred_fallthru
        _
      %p155 = scmp.le.s32.totalorder 1, %s11
      %p156 = scmp.lt.s32.totalorder %s11, 3
      %p157 = pnand %p155, %p156
      %p158 = pneg %p157
      // Predicated region
      $region25: #{tpu_custom_call.1} parent=5 // pred_check
        _
      $region26: #{tpu_custom_call.1} parent=5 // pred_check_branch
        %160 = sbr.rel (%p157) target = $region28
      $region27: #{tpu_custom_call.1} parent=5 // pred_region
        %s161 = ssub.s32 %s11, 1
        %p162 = scmp.lt.s32.totalorder %s21, 1
        %s163 = scalar_select %p162, %s21, 1
        %p164 = scmp.lt.s32.totalorder %s23, 0
        %s165 = scalar_select %p164, %s23, 0
        %s166 = sadd.s32 %s165, %s163
        %s167 = smul.addr %s166, 8
        %s168 = scalar_lea.vmem %s0, %s167
        %p169 = pneg %p58
        %p170 = pneg %p55
        %p171 = scmp.lt.s32.totalorder %s21, 1
        %s172 = scalar_select %p171, %s21, 1
        %p173 = scmp.lt.s32.totalorder %s22, 0
        %s174 = scalar_select %p173, %s22, 0
        %s175 = sadd.s32 %s174, %s172
        %s176 = smul.addr %s175, 8
        %s177 = scalar_lea.vmem %s1, %s176
        %p178 = pneg %p86
        %p179 = pneg %p83
        %p180 = pneg %p116
        %p181 = pneg %p113
        %s182 = sand.u32 %s103, 1
        %s183 = scalar_lea.sflag [#allocation3], %s182
        %s184 = sand.u32 %s103, 1
        %s185 = smul.addr %s184, 8
        %s186 = scalar_lea.vmem [#allocation2], %s185
        %p187 = scmp.lt.s32.totalorder %s21, 1
        %s188 = scalar_select %p187, %s21, 1
        %p189 = scmp.lt.s32.totalorder %s23, 0
        %s190 = scalar_select %p189, %s23, 0
        %s191 = sadd.s32 %s190, %s188
        %s192 = smul.addr %s191, 8
        %s193 = scalar_lea.vmem %s0, %s192
        %p194 = scmp.lt.s32.totalorder %s21, 1
        %s195 = scalar_select %p194, %s21, 1
        %p196 = scmp.lt.s32.totalorder %s22, 0
        %s197 = scalar_select %p196, %s22, 0
        %s198 = sadd.s32 %s197, %s195
        %s199 = smul.addr %s198, 8
        %s200 = scalar_lea.vmem %s1, %s199
        %v202 = vld [vmem:[%s193] sm:$0xff]
        %v203 = vlaneseq
        %v204 = vand.u32 %v203, 127
        %205 = vset.pattern.permute.xlu0 0
        %206 = vperm.xlu0 %205, %v202
        %v207 = vpop.permute.xlu0 %206
        %vm208 = vcmp.eq.s32.totalorder %v204, %v207
        %v209 = vld [vmem:[%s200] sm:$0xff]
        %v210 = vsel %vm208, 1, 0
        %v211 = vcvt.s32.f32 %v210
        %v212 = vpack.c.bf16 %v211, %v211
        %v213 = vpack.c.bf16 %v209, %v209
        %v214 = vunpack.c.l.bf16 %v213
        %v215 = vsub.f32 %v209, %v214
        %v216 = vpack.c.bf16 %v215, %v215
        %v217 = vunpack.c.l.bf16 %v216
        %v218 = vsub.f32 %v215, %v217
        %v219 = vpack.c.bf16 %v218, %v218
        %vm220 = vcmask 64512
        %v222 = vsel %vm220, %v212, 0
        %vm224 = vcmask 1043456
        %v226 = vsel %vm224, %v216, 0
        %228 = vmatprep.subr.bf16.mxu0 0
        %229 = vmatpush1.bf16.msra.mxu0 0
        %230 = vmatprep.subr.bf16.mxu0 0
        %231 = vmatpush1.bf16.msra.mxu0 0
        %232 = vmatprep.subr.bf16.mxu0 0
        %233 = vmatpush1.bf16.msra.mxu0 0
        %234 = vmatprep.subr.bf16.mxu0 0
        %235 = vmatpush1.bf16.msra.mxu0 0
        %236 = vmatprep.subr.bf16.mxu0 0
        %237 = vmatpush1.bf16.msra.mxu0 0
        %238 = vmatprep.subr.bf16.mxu0 0
        %239 = vmatpush1.bf16.msra.mxu0 0
        %240 = vmatprep.subr.bf16.mxu0 0
        %241 = vmatpush1.bf16.msra.mxu0 0
        %242 = vmatprep.subr.bf16.mxu0 0
        %243 = vmatpush1.bf16.msra.mxu0 %v226
        %244 = vmatprep.subr.bf16.mxu0 0
        %245 = vmatpush2.bf16.msra.mxu0 0
        %246 = vmatprep.subr.bf16.mxu0 0
        %247 = vmatpush2.bf16.msra.mxu0 0
        %248 = vmatprep.subr.bf16.mxu0 0
        %249 = vmatpush2.bf16.msra.mxu0 0
        %250 = vmatprep.subr.bf16.mxu0 0
        %251 = vmatpush2.bf16.msra.mxu0 0
        %252 = vmatprep.subr.bf16.mxu0 0
        %253 = vmatpush2.bf16.msra.mxu0 0
        %254 = vmatprep.subr.bf16.mxu0 0
        %255 = vmatpush2.bf16.msra.mxu0 0
        %256 = vmatprep.subr.bf16.mxu0 0
        %257 = vmatpush2.bf16.msra.mxu0 0
        %258 = vmatprep.subr.bf16.mxu0 0
        %259 = vmatpush2.bf16.msra.mxu0 0
        %260 = vmatprep.mubr.bf16.mxu0 0
        %261 = vmatmul.mubr.bf16.gmra.mxu0 %v222
        %v262 = vpop.f32.mrf.mxu0
        %v263 = vadd.f32 0.0, %v262
        %v264 = vpop.f32.mrf.mxu0
        %v265 = vpop.f32.mrf.mxu0
        %v266 = vpop.f32.mrf.mxu0
        %267 = vdwg.mxu0
        %v269 = vsel %vm224, %v213, 0
        %271 = vmatprep.subr.bf16.mxu0 0
        %272 = vmatpush1.bf16.msra.mxu0 0
        %273 = vmatprep.subr.bf16.mxu0 0
        %274 = vmatpush1.bf16.msra.mxu0 0
        %275 = vmatprep.subr.bf16.mxu0 0
        %276 = vmatpush1.bf16.msra.mxu0 0
        %277 = vmatprep.subr.bf16.mxu0 0
        %278 = vmatpush1.bf16.msra.mxu0 0
        %279 = vmatprep.subr.bf16.mxu0 0
        %280 = vmatpush1.bf16.msra.mxu0 0
        %281 = vmatprep.subr.bf16.mxu0 0
        %282 = vmatpush1.bf16.msra.mxu0 0
        %283 = vmatprep.subr.bf16.mxu0 0
        %284 = vmatpush1.bf16.msra.mxu0 0
        %285 = vmatprep.subr.bf16.mxu0 0
        %286 = vmatpush1.bf16.msra.mxu0 %v269
        %287 = vmatprep.subr.bf16.mxu0 0
        %288 = vmatpush2.bf16.msra.mxu0 0
        %289 = vmatprep.subr.bf16.mxu0 0
        %290 = vmatpush2.bf16.msra.mxu0 0
        %291 = vmatprep.subr.bf16.mxu0 0
        %292 = vmatpush2.bf16.msra.mxu0 0
        %293 = vmatprep.subr.bf16.mxu0 0
        %294 = vmatpush2.bf16.msra.mxu0 0
        %295 = vmatprep.subr.bf16.mxu0 0
        %296 = vmatpush2.bf16.msra.mxu0 0
        %297 = vmatprep.subr.bf16.mxu0 0
        %298 = vmatpush2.bf16.msra.mxu0 0
        %299 = vmatprep.subr.bf16.mxu0 0
        %300 = vmatpush2.bf16.msra.mxu0 0
        %301 = vmatprep.subr.bf16.mxu0 0
        %302 = vmatpush2.bf16.msra.mxu0 0
        %303 = vmatprep.mubr.bf16.mxu0 0
        %304 = vmatmul.mubr.bf16.gmra.mxu0 %v222
        %v305 = vpop.f32.mrf.mxu0
        %v306 = vadd.f32 %v263, %v305
        %v307 = vpop.f32.mrf.mxu0
        %v308 = vpop.f32.mrf.mxu0
        %v309 = vpop.f32.mrf.mxu0
        %310 = vdwg.mxu0
        %v312 = vsel %vm224, %v219, 0
        %314 = vmatprep.subr.bf16.mxu0 0
        %315 = vmatpush1.bf16.msra.mxu0 0
        %316 = vmatprep.subr.bf16.mxu0 0
        %317 = vmatpush1.bf16.msra.mxu0 0
        %318 = vmatprep.subr.bf16.mxu0 0
        %319 = vmatpush1.bf16.msra.mxu0 0
        %320 = vmatprep.subr.bf16.mxu0 0
        %321 = vmatpush1.bf16.msra.mxu0 0
        %322 = vmatprep.subr.bf16.mxu0 0
        %323 = vmatpush1.bf16.msra.mxu0 0
        %324 = vmatprep.subr.bf16.mxu0 0
        %325 = vmatpush1.bf16.msra.mxu0 0
        %326 = vmatprep.subr.bf16.mxu0 0
        %327 = vmatpush1.bf16.msra.mxu0 0
        %328 = vmatprep.subr.bf16.mxu0 0
        %329 = vmatpush1.bf16.msra.mxu0 %v312
        %330 = vmatprep.subr.bf16.mxu0 0
        %331 = vmatpush2.bf16.msra.mxu0 0
        %332 = vmatprep.subr.bf16.mxu0 0
        %333 = vmatpush2.bf16.msra.mxu0 0
        %334 = vmatprep.subr.bf16.mxu0 0
        %335 = vmatpush2.bf16.msra.mxu0 0
        %336 = vmatprep.subr.bf16.mxu0 0
        %337 = vmatpush2.bf16.msra.mxu0 0
        %338 = vmatprep.subr.bf16.mxu0 0
        %339 = vmatpush2.bf16.msra.mxu0 0
        %340 = vmatprep.subr.bf16.mxu0 0
        %341 = vmatpush2.bf16.msra.mxu0 0
        %342 = vmatprep.subr.bf16.mxu0 0
        %343 = vmatpush2.bf16.msra.mxu0 0
        %344 = vmatprep.subr.bf16.mxu0 0
        %345 = vmatpush2.bf16.msra.mxu0 0
        %346 = vmatprep.mubr.bf16.mxu0 0
        %347 = vmatmul.mubr.bf16.gmra.mxu0 %v222
        %v348 = vpop.f32.mrf.mxu0
        %v349 = vadd.f32 0.0, %v348
        %v350 = vpop.f32.mrf.mxu0
        %v351 = vpop.f32.mrf.mxu0
        %v352 = vpop.f32.mrf.mxu0
        %353 = vdwg.mxu0
        %v354 = vadd.f32 %v306, %v349
        %355 = vst [vmem:[%s186] sm:$0xff] %v354
        %s356 = sand.u32 %s103, 1
        %s357 = scalar_lea.sflag [#allocation3], %s356
        %s358 = sand.u32 %s103, 1
        %s359 = smul.addr %s358, 8
        %s360 = scalar_lea.vmem [#allocation2], %s359
        // Predicated region
        $region29: #{tpu_custom_call.1} parent=27 // pred_check
          %p361 = pneg %p113
        $region30: #{tpu_custom_call.1} parent=27 // pred_check_branch
          %363 = sbr.rel (%p361) target = $region32
        $region31: #{tpu_custom_call.1} parent=27 // pred_region
          %s365 = ssub.s32 128, 128
          %366 = vsyncadd %s357, %s365
          %s367 = sadd.s32 %s22, %s23
          %s368 = sadd.s32 %s367, %s21
          %s369 = smul.addr %s368, 128
          %s370 = scalar_lea.hbm %s2, %s369
          %s372 = sshll.u32 %s360, 4
          %s373 = int_to_ptr.vmem [resolvable:$true] %s372
          %375 = dma.vmem_to_hbm [thread:$0]  %s373, 128, %s370, %s357
        $region32: #{tpu_custom_call.1} parent=27 // pred_fallthru
          _
      $region28: #{tpu_custom_call.1} parent=5 // pred_fallthru
        _
      %p376 = scmp.le.s32.totalorder 2, %s11
      // Predicated region
      $region33: #{tpu_custom_call.1} parent=5 // pred_check
        %p377 = pneg %p376
      $region34: #{tpu_custom_call.1} parent=5 // pred_check_branch
        %379 = sbr.rel (%p377) target = $region36
      $region35: #{tpu_custom_call.1} parent=5 // pred_region
        %s380 = ssub.s32 %s11, 2
        // Predicated region
        $region37: #{tpu_custom_call.1} parent=35 // pred_check
          %p381 = pneg %p119
        $region38: #{tpu_custom_call.1} parent=35 // pred_check_branch
          %383 = sbr.rel (%p381) target = $region40
        $region39: #{tpu_custom_call.1} parent=35 // pred_region
          %s384 = sand.u32 %s104, 1
          %s385 = scalar_lea.sflag [#allocation3], %s384
          %s386 = sand.u32 %s104, 1
          %s387 = smul.addr %s386, 8
          %s388 = scalar_lea.vmem [#allocation2], %s387
          %389 = dma.done %s385, 128
        $region40: #{tpu_custom_call.1} parent=35 // pred_fallthru
          _
      $region36: #{tpu_custom_call.1} parent=5 // pred_fallthru
        _
    $region6: #{tpu_custom_call.1} parent=1 // loop_footer
      %s15 = sadd.s32 1, %s11
    $region7: #{tpu_custom_call.1} parent=1 // loop_footer_branch
      %10 = sbr.rel target = $region3
    $region8: #{tpu_custom_call.1} parent=1 // loop_exit
      _
    %390 = vsyncpa [#allocation3], 1
    %s391 = scalar_lea.sflag [#allocation3], 1
    %392 = vsyncpa %s391, 1

</llo_original>
